<compile_context>
chip_gen: v7x
topology: tpu7x:2x2x1
jax: 0.10.0
libtpu: 0.0.40
codegen_flags: <defaults>
</compile_context>

<pallas_src>
import math
from functools import partial

import jax
import jax.numpy as jnp
from jax.experimental import pallas as pl
from jax.experimental.pallas import tpu as pltpu

LEAKY_SLOPE = 0.2
ACT_GAIN = math.sqrt(2.0)          # ScaledLeakyReLU gain
INV_SQRT2 = 1.0 / math.sqrt(2.0)
VMEM_LIMIT = 32 * 1024 * 1024      # explicit scoped-VMEM budget (safe on v5e/v6e/v7x)


# ------------------------------- kernel helpers -------------------------------

def _leaky(v):
    return jnp.where(v >= 0.0, v, LEAKY_SLOPE * v) * ACT_GAIN


def _sp(start, size, stride):
    """Slice helper: plain static slice for stride 1, strided dslice otherwise."""
    if stride == 1:
        return slice(start, start + size)
    return pl.ds(start, size, stride=stride)


def _conv_path(src_ref, pad_ref, w_ref, *, stride, kh, kw, pad, blur, ho, wo):
    """(optional separable blur) -> in-VMEM zero pad -> direct strided KHxKW conv.

    The conv is one im2col matmul in bf16 with f32 accumulation: the KH*KW
    (strided) tap patches are gathered from the padded scratch ref and
    concatenated along the channel/lane axis so the contraction width is
    KH*KW*Cin.  Returns the (ho*wo, Cout) f32 pre-activation (no bias).
    """
    h, w, c = src_ref.shape
    if blur or pad > 0:
        m = (pad_ref.shape[0] - h) // 2            # zero margin held in the scratch
        pad_ref[...] = jnp.zeros(pad_ref.shape, pad_ref.dtype)
        pad_ref[m:m + h, m:m + w, :] = src_ref[...]
        if blur:
            # separable [1,2,1] (x) [1,2,1] / 16 binomial blur (zero padded),
            # written back in place; the scratch border stays zero, which is
            # exactly the conv's zero padding.
            xp = pad_ref[m - 1:m + h + 1, m - 1:m + w + 1, :]          # (h+2, w+2, c)
            th = xp[:, 0:w, :] + 2.0 * xp[:, 1:w + 1, :] + xp[:, 2:w + 2, :]
            xb = (th[0:h, :, :] + 2.0 * th[1:h + 1, :, :]
                  + th[2:h + 2, :, :]) * (1.0 / 16.0)
            pad_ref[m:m + h, m:m + w, :] = xb
        read_ref, base = pad_ref, m - pad
    else:
        read_ref, base = src_ref, 0

    taps = []
    for ky in range(kh):                            # unrolled at trace time
        for kx in range(kw):
            patch = read_ref[_sp(base + ky, ho, stride),
                             _sp(base + kx, wo, stride), :]
            taps.append(patch.astype(jnp.bfloat16))
    lhs = taps[0] if len(taps) == 1 else jnp.concatenate(taps, axis=-1)
    lhs = lhs.reshape(ho * wo, kh * kw * c)
    return jnp.dot(lhs, w_ref[...], preferred_element_type=jnp.float32)


# -------------------------------- Pallas kernels -------------------------------

def _layer_kernel(x_ref, w_ref, b_ref, o_ref, *scratch, stride, kh, kw, pad, blur,
                  activation, ho, wo, cout):
    """One ScaledConvolutionLayer: [blur] -> conv(stride) -> bias -> [scaled lrelu]."""
    pad_ref = scratch[0] if scratch else None
    acc = _conv_path(x_ref, pad_ref, w_ref, stride=stride, kh=kh, kw=kw, pad=pad,
                     blur=blur, ho=ho, wo=wo)
    acc = acc + b_ref[...]
    if activation:
        acc = _leaky(acc)
    o_ref[...] = acc.reshape(ho, wo, cout)


def _res_tail_kernel(r_ref, x_ref, w2_ref, b2_ref, ws_ref, o_ref, pad_ref, *,
                     stride, kh, kw, pad, ho, wo, cout):
    """Fused tail of ResidualScaledConvolutionLayer:

        res = lrelu(conv3x3_s2(blur(r)) + b2)     (2nd conv of the residual branch)
        sc  = lrelu(conv1x1_s2(blur(x)))          (shortcut branch, no bias)
        out = (res + sc) / sqrt(2)
    """
    res = _conv_path(r_ref, pad_ref, w2_ref, stride=stride, kh=kh, kw=kw, pad=pad,
                     blur=True, ho=ho, wo=wo)
    res = _leaky(res + b2_ref[...])
    sc = _conv_path(x_ref, pad_ref, ws_ref, stride=stride, kh=1, kw=1, pad=0,
                    blur=True, ho=ho, wo=wo)
    sc = _leaky(sc)                                # shortcut has activation, no bias
    o_ref[...] = ((res + sc) * INV_SQRT2).reshape(ho, wo, cout)


# ---------------------------------- wrappers ------------------------------------

def _lane_pad(cout):
    # A width-1 output (final head) forces masked vst and a 1-lane matmul result;
    # pad it to a lane-dense width inside the kernel and slice it off outside.
    return cout if cout >= 8 else 128


def _prep_weight(w, cout_pad):
    kh, kw, cin, cout = w.shape
    scale = math.sqrt(2.0 / (cin * kh * kw))       # equalized-LR (He) scale, folded here
    w2 = (w.astype(jnp.float32) * scale).reshape(kh * kw * cin, cout)
    if cout_pad > cout:
        w2 = jnp.pad(w2, ((0, 0), (0, cout_pad - cout)))
    return w2.astype(jnp.bfloat16)


def _prep_bias(b, cout, cout_pad):
    if b is None:
        b = jnp.zeros((cout,), jnp.float32)
    b = b.astype(jnp.float32)
    if cout_pad > cout:
        b = jnp.pad(b, (0, cout_pad - cout))
    return b.reshape(1, cout_pad)


def _compiler_params():
    return pltpu.CompilerParams(dimension_semantics=("parallel",),
                                vmem_limit_bytes=VMEM_LIMIT)


def apply_scaled_conv_layer(p, x):
    """x: (N, H, W, Cin) NHWC.  One fused pallas_call per layer."""
    # TODO(synk): for large spatial resolutions add output-row halo tiling (grid
    # over rows) so a single image block need not fit VMEM; per-image blocks are
    # ample for the shapes exercised here.
    n, h, w, cin = x.shape
    kh, kw, _, cout = p["w"].shape
    stride, padding, blur, act = p["stride"], p["padding"], p["blur"], p["activation"]
    ho = (h + 2 * padding - kh) // stride + 1
    wo = (w + 2 * padding - kw) // stride + 1
    cp = _lane_pad(cout)

    wp = _prep_weight(p["w"], cp)
    bp = _prep_bias(p["b"], cout, cp)

    scratch = []
    if blur or padding > 0:
        m = max(padding, 1) if blur else padding
        scratch = [pltpu.VMEM((h + 2 * m, w + 2 * m, cin), jnp.float32)]

    out = pl.pallas_call(
        partial(_layer_kernel, stride=stride, kh=kh, kw=kw, pad=padding, blur=blur,
                activation=act, ho=ho, wo=wo, cout=cp),
        out_shape=jax.ShapeDtypeStruct((n, ho, wo, cp), jnp.float32),
        grid=(n,),
        in_specs=[
            pl.BlockSpec((None, h, w, cin), lambda i: (i, 0, 0, 0)),
            pl.BlockSpec(wp.shape, lambda i: (0, 0)),
            pl.BlockSpec(bp.shape, lambda i: (0, 0)),
        ],
        out_specs=pl.BlockSpec((None, ho, wo, cp), lambda i: (i, 0, 0, 0)),
        scratch_shapes=scratch,
        compiler_params=_compiler_params(),
    )(x, wp, bp)
    return out[..., :cout] if cp != cout else out


def apply_res_layer(p, x):
    """ResidualScaledConvolutionLayer: (res2(res1(x)) + shortcut(x)) / sqrt(2).

    res1 runs as one fused conv kernel; res2 + 1x1 shortcut + residual combine
    run as a single fused kernel (blur / pad / strided conv / bias / act / add
    all stay in VMEM — no intermediate HBM round trips).
    """
    r = apply_scaled_conv_layer(p["res1"], x)

    p2, ps = p["res2"], p["short"]
    n, h, w, cin = r.shape
    kh, kw, _, cout = p2["w"].shape
    stride, padding = p2["stride"], p2["padding"]
    ho = (h + 2 * padding - kh) // stride + 1
    wo = (w + 2 * padding - kw) // stride + 1
    cp = _lane_pad(cout)

    w2p = _prep_weight(p2["w"], cp)
    b2p = _prep_bias(p2["b"], cout, cp)
    wsp = _prep_weight(ps["w"], cp)

    out = pl.pallas_call(
        partial(_res_tail_kernel, stride=stride, kh=kh, kw=kw, pad=padding,
                ho=ho, wo=wo, cout=cp),
        out_shape=jax.ShapeDtypeStruct((n, ho, wo, cp), jnp.float32),
        grid=(n,),
        in_specs=[
            pl.BlockSpec((None, h, w, cin), lambda i: (i, 0, 0, 0)),   # res1 output
            pl.BlockSpec((None, h, w, cin), lambda i: (i, 0, 0, 0)),   # block input
            pl.BlockSpec(w2p.shape, lambda i: (0, 0)),
            pl.BlockSpec(b2p.shape, lambda i: (0, 0)),
            pl.BlockSpec(wsp.shape, lambda i: (0, 0)),
        ],
        out_specs=pl.BlockSpec((None, ho, wo, cp), lambda i: (i, 0, 0, 0)),
        scratch_shapes=[pltpu.VMEM((h + 2, w + 2, cin), jnp.float32)],
        compiler_params=_compiler_params(),
    )(r, x, w2p, b2p, wsp)
    return out[..., :cout] if cp != cout else out


# ----------------------------- module translation -------------------------------

def min_max(x, m, M):
    return max(m, min(M, x))


def init_scaled_conv_layer(key, cin, cout, k, *, stride=1, padding=0,
                           bias=True, blur=True, activation=True):
    w = jax.random.normal(key, (k, k, cin, cout), jnp.float32)   # N(0,1); eq-lr folded at call
    b = jnp.zeros((cout,), jnp.float32) if bias else None
    return {"w": w, "b": b, "stride": stride, "padding": padding,
            "activation": activation, "blur": bool(blur and stride != 1)}


def init_res_layer(key, cin, cout, k=3, stride=2, padding=1):
    k1, k2, k3 = jax.random.split(key, 3)
    return {
        "res1": init_scaled_conv_layer(k1, cin, cin, k, stride=1, padding=padding,
                                       bias=True, blur=True, activation=True),
        "res2": init_scaled_conv_layer(k2, cin, cout, k, stride=stride, padding=padding,
                                       bias=True, blur=True, activation=True),
        "short": init_scaled_conv_layer(k3, cin, cout, 1, stride=stride, padding=0,
                                        bias=False, blur=True, activation=True),
    }


def init_discriminator(key, blocks=4, in_channels=3, base_channels=32):
    keys = jax.random.split(key, blocks + 2)
    layers = [("conv", init_scaled_conv_layer(keys[0], in_channels, base_channels, 1,
                                              stride=1, padding=0, bias=True,
                                              blur=True, activation=True))]
    e_out = 0
    for i in range(blocks):
        e_in = min_max(i, 0, 3)
        e_out = min_max(i + 1, 0, 3)
        layers.append(("res", init_res_layer(keys[1 + i],
                                             base_channels * 2 ** e_in,
                                             base_channels * 2 ** e_out)))
    layers.append(("conv", init_scaled_conv_layer(keys[-1], base_channels * 2 ** e_out,
                                                  1, 1, stride=1, padding=0, bias=True,
                                                  blur=True, activation=False)))
    return layers


def discriminator_forward(layers, x_nchw):
    """Mirrors Discriminator.forward: returns (list of intermediate features, final)."""
    x = jnp.transpose(x_nchw, (0, 2, 3, 1)).astype(jnp.float32)   # NCHW -> NHWC
    ys = []
    for kind, p in layers:
        x = apply_scaled_conv_layer(p, x) if kind == "conv" else apply_res_layer(p, x)
        ys.append(jnp.transpose(x, (0, 3, 1, 2)))                 # back to NCHW
    return ys[:-1], ys[-1]


# --------------------------------- main ------------------------------------------

if __name__ == "__main__":
    key = jax.random.PRNGKey(0)
    k_params, k_x = jax.random.split(key)

    blocks, in_channels, base_channels = 2, 3, 8       # small config
    layers = init_discriminator(k_params, blocks=blocks,
                                in_channels=in_channels,
                                base_channels=base_channels)

    x = jax.random.normal(k_x, (2, in_channels, 16, 16), jnp.float32)   # NCHW, like PyTorch

    feats, out = discriminator_forward(layers, x)
    out = jax.block_until_ready(out)
    for f in feats:
        jax.block_until_ready(f)

    assert out.shape == (2, 1, 16 // 2 ** blocks, 16 // 2 ** blocks), out.shape
    assert len(feats) == blocks + 1
    print("KERNEL_OK")
</pallas_src>

<mosaic_0001>
module attributes {stable_mosaic.version = 11 : i64} {
  func.func @_layer_kernel(%arg0: i32, %arg1: memref<1x16x16x3xf32, #tpu.memory_space<vmem>>, %arg2: memref<3x8xbf16, #tpu.memory_space<vmem>>, %arg3: memref<1x8xf32, #tpu.memory_space<vmem>>, %arg4: memref<1x16x16x8xf32, #tpu.memory_space<vmem>>) attributes {dimension_semantics = [#tpu.dimension_semantics<parallel>], iteration_bounds = array<i64: 2>, scalar_prefetch = 0 : i64, scratch_operands = 0 : i64, tpu.core_type = #tpu.core_type<tc>, window_params = [{transform_indices = @transform_0, window_bounds = array<i64: 1, 16, 16, 3>}, {pipeline_mode = #tpu.pipeline_mode<synchronous>, transform_indices = @transform_1, window_bounds = array<i64: 3, 8>}, {pipeline_mode = #tpu.pipeline_mode<synchronous>, transform_indices = @transform_2, window_bounds = array<i64: 1, 8>}, {transform_indices = @transform_3, window_bounds = array<i64: 1, 16, 16, 8>}]} {
    %c0 = arith.constant 0 : index
    %c0_0 = arith.constant 0 : index
    %c0_1 = arith.constant 0 : index
    %c0_2 = arith.constant 0 : index
    %0 = vector.load %arg1[%c0, %c0_0, %c0_1, %c0_2] : memref<1x16x16x3xf32, #tpu.memory_space<vmem>>, vector<1x16x16x3xf32>
    %1 = vector.shape_cast %0 : vector<1x16x16x3xf32> to vector<16x16x3xf32>
    %2 = arith.truncf %1 : vector<16x16x3xf32> to vector<16x16x3xbf16>
    %3 = vector.shape_cast %2 : vector<16x16x3xbf16> to vector<256x3xbf16>
    %c0_3 = arith.constant 0 : index
    %c0_4 = arith.constant 0 : index
    %4 = vector.load %arg2[%c0_3, %c0_4] : memref<3x8xbf16, #tpu.memory_space<vmem>>, vector<3x8xbf16>
    %cst = arith.constant dense<0.000000e+00> : vector<256x8xf32>
    %5 = tpu.matmul %3, %4, %cst {dimension_numbers = #tpu.dot_dimension_numbers<[1], [0], [0], [1], [0, 0, 1, 1], [], []>} : vector<256x3xbf16>, vector<3x8xbf16>, vector<256x8xf32> -> vector<256x8xf32>
    %c0_5 = arith.constant 0 : index
    %c0_6 = arith.constant 0 : index
    %6 = vector.load %arg3[%c0_5, %c0_6] : memref<1x8xf32, #tpu.memory_space<vmem>>, vector<1x8xf32>
    %7 = vector.broadcast %6 : vector<1x8xf32> to vector<256x8xf32>
    %8 = arith.addf %5, %7 : vector<256x8xf32>
    %cst_7 = arith.constant 0.000000e+00 : f32
    %9 = vector.broadcast %cst_7 : f32 to vector<256x8xf32>
    %10 = arith.cmpf oge, %8, %9 : vector<256x8xf32>
    %cst_8 = arith.constant 2.000000e-01 : f32
    %11 = vector.broadcast %cst_8 : f32 to vector<256x8xf32>
    %12 = arith.mulf %11, %8 : vector<256x8xf32>
    %13 = arith.select %10, %8, %12 : vector<256x8xi1>, vector<256x8xf32>
    %cst_9 = arith.constant 1.41421354 : f32
    %14 = vector.broadcast %cst_9 : f32 to vector<256x8xf32>
    %15 = arith.mulf %13, %14 : vector<256x8xf32>
    %16 = vector.shape_cast %15 : vector<256x8xf32> to vector<16x16x8xf32>
    %c0_10 = arith.constant 0 : index
    %c0_11 = arith.constant 0 : index
    %c0_12 = arith.constant 0 : index
    %c0_13 = arith.constant 0 : index
    %17 = vector.load %arg4[%c0_10, %c0_11, %c0_12, %c0_13] : memref<1x16x16x8xf32, #tpu.memory_space<vmem>>, vector<1x16x16x8xf32>
    %18 = vector.shape_cast %17 : vector<1x16x16x8xf32> to vector<16x16x8xf32>
    %19 = vector.shape_cast %16 : vector<16x16x8xf32> to vector<1x16x16x8xf32>
    tpu.vector_store %arg4[%c0_10, %c0_11, %c0_12, %c0_13], %19 {strides = array<i32>} : memref<1x16x16x8xf32, #tpu.memory_space<vmem>>, vector<1x16x16x8xf32>,
    return
  }
  func.func @transform_0(%arg0: i32) -> (i32, i32, i32, i32) {
    %c0_i32 = arith.constant 0 : i32
    %c0_i32_0 = arith.constant 0 : i32
    %c0_i32_1 = arith.constant 0 : i32
    %c0_i32_2 = arith.constant 0 : i32
    return %arg0, %c0_i32, %c0_i32_0, %c0_i32_1 : i32, i32, i32, i32
  }
  func.func @transform_1(%arg0: i32) -> (i32, i32) {
    %c0_i32 = arith.constant 0 : i32
    %c0_i32_0 = arith.constant 0 : i32
    %c0_i32_1 = arith.constant 0 : i32
    return %c0_i32, %c0_i32_0 : i32, i32
  }
  func.func @transform_2(%arg0: i32) -> (i32, i32) {
    %c0_i32 = arith.constant 0 : i32
    %c0_i32_0 = arith.constant 0 : i32
    %c0_i32_1 = arith.constant 0 : i32
    return %c0_i32, %c0_i32_0 : i32, i32
  }
  func.func @transform_3(%arg0: i32) -> (i32, i32, i32, i32) {
    %c0_i32 = arith.constant 0 : i32
    %c0_i32_0 = arith.constant 0 : i32
    %c0_i32_1 = arith.constant 0 : i32
    %c0_i32_2 = arith.constant 0 : i32
    return %arg0, %c0_i32, %c0_i32_0, %c0_i32_1 : i32, i32, i32, i32
  }
}

</mosaic_0001>

<llo_original>
// kernel: tpu_custom_call.1
$region0: #{tpu_custom_call.1}
  #allocation0 [shape = 'u32[]', space=smem, size = 0x4, offset = 0x4, fixed_abs, tag = 'smem constant byte address 0x4 - core index']
  #allocation1 [shape = 'u32[144,128]{1,0:T(1,128)}', space=vmem, size = 0x12000, scoped, tag = 'internal scratch']
  %s0 = inlined_call_operand.vmem [shape: f32[2,16,16,3], index: 0, kind: input, shape index: {}]
  %s1 = inlined_call_operand.vmem [shape: bf16[3,8], index: 1, kind: input, shape index: {}]
  %s2 = inlined_call_operand.vmem [shape: f32[1,8], index: 2, kind: input, shape index: {}]
  %s3 = inlined_call_operand.vmem [shape: f32[2,16,16,8], index: 3, kind: output, shape index: {}]
  %s4 = sld [smem:[#allocation0]]
  $region45: #{tpu_custom_call.1} parent=0
    _
  %s6 = ssub.s32 1, %s4
  %s7 = scalar_select 0, %s6, %s4
  loop: start=0, step=1, limit=4
  $region2: #{tpu_custom_call.1} parent=0 // loop_pre_header
    _
  $region3: #{tpu_custom_call.1} parent=0 // loop_header
    %s9 = sphi 0, %s13
    %p10 = scmp.ge.s32.totalorder %s9, 4
    %s19 = sphi 0, %s21
    %s22 = sphi 0, %s19
    %s23 = sphi 0, %s22
    %s39 = sphi 0, %s23
    %s43 = sphi 0, %s43
    %s45 = sphi 0, %s43
    %s46 = sphi 0, %s45
    %s60 = sphi 0, %s46
    %s64 = sphi 0, %s64
    %s66 = sphi 0, %s64
    %s67 = sphi 0, %s66
    %s81 = sphi 0, %s67
    %s87 = sphi 0, %s89
    %s90 = sphi 0, %s87
    %s91 = sphi 0, %s90
    %s107 = sphi 0, %s91
  $region4: #{tpu_custom_call.1} parent=0 // loop_header_branch
    %12 = sbr.rel (%p10) target = $region8
  $region5: #{tpu_custom_call.1} parent=0 // loop_body
    %s14 = ssub.s32 %s9, 1
    %s15 = ssub.s32 %s9, 2
    %s16 = sadd.s32 %s9, 1
    %s17 = ssub.s32 %s9, %s16
    %p18 = scmp.eq.s32.totalorder %s17, 0
    %s20 = sadd.s32 %s19, 1
    %s21 = scalar_select %p18, %s19, %s20
    %p24 = pneg %p18
    %p25 = scmp.eq.s32.totalorder %s9, 1
    %p26 = por %p24, %p25
    %p27 = scmp.ne.s32.totalorder %s19, %s22
    %p28 = scmp.eq.s32.totalorder %s9, 0
    %p29 = por %p27, %p28
    %p30 = scmp.ne.s32.totalorder %s19, %s22
    %p31 = scmp.eq.s32.totalorder %s14, 1
    %p32 = por %p30, %p31
    %p33 = scmp.ne.s32.totalorder %s22, %s23
    %p34 = scmp.eq.s32.totalorder %s14, 0
    %p35 = por %p33, %p34
    %p36 = scmp.ne.s32.totalorder %s22, %s23
    %p37 = scmp.eq.s32.totalorder %s15, 1
    %p38 = por %p36, %p37
    %p40 = scmp.ne.s32.totalorder %s23, %s39
    %p41 = scmp.eq.s32.totalorder %s15, 0
    %p42 = por %p40, %p41
    %s44 = sadd.s32 %s43, 1
    %p47 = scmp.eq.s32.totalorder %s9, 1
    %p48 = scmp.ne.s32.totalorder %s43, %s45
    %p49 = scmp.eq.s32.totalorder %s9, 0
    %p50 = por %p48, %p49
    %p51 = scmp.ne.s32.totalorder %s43, %s45
    %p52 = scmp.eq.s32.totalorder %s14, 1
    %p53 = por %p51, %p52
    %p54 = scmp.ne.s32.totalorder %s45, %s46
    %p55 = scmp.eq.s32.totalorder %s14, 0
    %p56 = por %p54, %p55
    %p57 = scmp.ne.s32.totalorder %s45, %s46
    %p58 = scmp.eq.s32.totalorder %s15, 1
    %p59 = por %p57, %p58
    %p61 = scmp.ne.s32.totalorder %s46, %s60
    %p62 = scmp.eq.s32.totalorder %s15, 0
    %p63 = por %p61, %p62
    %s65 = sadd.s32 %s64, 1
    %p68 = scmp.eq.s32.totalorder %s9, 1
    %p69 = scmp.ne.s32.totalorder %s64, %s66
    %p70 = scmp.eq.s32.totalorder %s9, 0
    %p71 = por %p69, %p70
    %p72 = scmp.ne.s32.totalorder %s64, %s66
    %p73 = scmp.eq.s32.totalorder %s14, 1
    %p74 = por %p72, %p73
    %p75 = scmp.ne.s32.totalorder %s66, %s67
    %p76 = scmp.eq.s32.totalorder %s14, 0
    %p77 = por %p75, %p76
    %p78 = scmp.ne.s32.totalorder %s66, %s67
    %p79 = scmp.eq.s32.totalorder %s15, 1
    %p80 = por %p78, %p79
    %p82 = scmp.ne.s32.totalorder %s67, %s81
    %p83 = scmp.eq.s32.totalorder %s15, 0
    %p84 = por %p82, %p83
    %s85 = ssub.s32 %s9, %s16
    %p86 = scmp.eq.s32.totalorder %s85, 0
    %s88 = sadd.s32 %s87, 1
    %s89 = scalar_select %p86, %s87, %s88
    %p92 = pneg %p86
    %p93 = scmp.eq.s32.totalorder %s9, 1
    %p94 = por %p92, %p93
    %p95 = scmp.ne.s32.totalorder %s87, %s90
    %p96 = scmp.eq.s32.totalorder %s9, 0
    %p97 = por %p95, %p96
    %p98 = scmp.ne.s32.totalorder %s87, %s90
    %p99 = scmp.eq.s32.totalorder %s14, 1
    %p100 = por %p98, %p99
    %p101 = scmp.ne.s32.totalorder %s90, %s91
    %p102 = scmp.eq.s32.totalorder %s14, 0
    %p103 = por %p101, %p102
    %p104 = scmp.ne.s32.totalorder %s90, %s91
    %p105 = scmp.eq.s32.totalorder %s15, 1
    %p106 = por %p104, %p105
    %p108 = scmp.ne.s32.totalorder %s91, %s107
    %p109 = scmp.eq.s32.totalorder %s15, 0
    %p110 = por %p108, %p109
    %p111 = scmp.le.s32.totalorder 1, %s9
    %p112 = scmp.lt.s32.totalorder %s9, 3
    %p113 = pnand %p111, %p112
    %p114 = pneg %p113
    // Predicated region
    $region9: #{tpu_custom_call.1} parent=5 // pred_check
      _
    $region10: #{tpu_custom_call.1} parent=5 // pred_check_branch
      %116 = sbr.rel (%p113) target = $region12
    $region11: #{tpu_custom_call.1} parent=5 // pred_region
      %s117 = ssub.s32 %s9, 1
      // Predicated region
      $region13: #{tpu_custom_call.1} parent=11 // pred_check
        %p118 = pneg %p56
      $region14: #{tpu_custom_call.1} parent=11 // pred_check_branch
        %120 = sbr.rel (%p118) target = $region16
      $region15: #{tpu_custom_call.1} parent=11 // pred_region
        _
      $region16: #{tpu_custom_call.1} parent=11 // pred_fallthru
        _
      // Predicated region
      $region17: #{tpu_custom_call.1} parent=11 // pred_check
        %p121 = pneg %p77
      $region18: #{tpu_custom_call.1} parent=11 // pred_check_branch
        %123 = sbr.rel (%p121) target = $region20
      $region19: #{tpu_custom_call.1} parent=11 // pred_region
        _
      $region20: #{tpu_custom_call.1} parent=11 // pred_fallthru
        _
    $region12: #{tpu_custom_call.1} parent=5 // pred_fallthru
      _
    %p124 = scmp.lt.s32.totalorder %s9, 2
    // Predicated region
    $region21: #{tpu_custom_call.1} parent=5 // pred_check
      %p125 = pneg %p124
    $region22: #{tpu_custom_call.1} parent=5 // pred_check_branch
      %127 = sbr.rel (%p125) target = $region24
    $region23: #{tpu_custom_call.1} parent=5 // pred_region
      // Predicated region
      $region25: #{tpu_custom_call.1} parent=23 // pred_check
        %p128 = pneg %p29
      $region26: #{tpu_custom_call.1} parent=23 // pred_check_branch
        %130 = sbr.rel (%p128) target = $region28
      $region27: #{tpu_custom_call.1} parent=23 // pred_region
        %p131 = scmp.lt.s32.totalorder %s9, 1
        %s132 = scalar_select %p131, %s9, 1
        %s133 = smul.addr %s132, 32
        %s134 = smul.addr %s133, 8
        %s135 = scalar_lea.vmem %s0, %s134
      $region28: #{tpu_custom_call.1} parent=23 // pred_fallthru
        _
    $region24: #{tpu_custom_call.1} parent=5 // pred_fallthru
      _
    %p136 = scmp.le.s32.totalorder 1, %s9
    %p137 = scmp.lt.s32.totalorder %s9, 3
    %p138 = pnand %p136, %p137
    %p139 = pneg %p138
    // Predicated region
    $region29: #{tpu_custom_call.1} parent=5 // pred_check
      _
    $region30: #{tpu_custom_call.1} parent=5 // pred_check_branch
      %141 = sbr.rel (%p138) target = $region32
    $region31: #{tpu_custom_call.1} parent=5 // pred_region
      %s142 = ssub.s32 %s9, 1
      %p143 = scmp.lt.s32.totalorder %s14, 1
      %s144 = scalar_select %p143, %s14, 1
      %s145 = smul.addr %s144, 32
      %s146 = smul.addr %s145, 8
      %s147 = scalar_lea.vmem %s0, %s146
      %p148 = pneg %p35
      %p149 = pneg %p32
      %p150 = pneg %p56
      %p151 = pneg %p53
      %p152 = pneg %p77
      %p153 = pneg %p74
      %p154 = pneg %p103
      %p155 = pneg %p100
      %p156 = scmp.lt.s32.totalorder %s14, 1
      %s157 = scalar_select %p156, %s14, 1
      %s158 = smul.addr %s157, 32
      %s159 = smul.addr %s158, 8
      %s160 = scalar_lea.vmem %s3, %s159
      %p161 = scmp.lt.s32.totalorder %s14, 1
      %s162 = scalar_select %p161, %s14, 1
      %s163 = smul.addr %s162, 32
      %s164 = smul.addr %s163, 8
      %s165 = scalar_lea.vmem %s0, %s164
      %p166 = scmp.lt.s32.totalorder %s14, 1
      %s167 = scalar_select %p166, %s14, 1
      %s168 = smul.addr %s167, 32
      %s169 = smul.addr %s168, 8
      %s170 = scalar_lea.vmem %s3, %s169
      %v172 = vld [vmem:[%s165] sm:$0xff]
      %v173 = vld [vmem:[%s165 + $0x8] sm:$0xff]
      %v174 = vld [vmem:[%s165 + $0x10] sm:$0xff]
      %v175 = vld [vmem:[%s165 + $0x18] sm:$0xff]
      %v176 = vld [vmem:[%s165 + $0x20] sm:$0xff]
      %v177 = vld [vmem:[%s165 + $0x28] sm:$0xff]
      %v178 = vld [vmem:[%s165 + $0x30] sm:$0xff]
      %v179 = vld [vmem:[%s165 + $0x38] sm:$0xff]
      %v180 = vld [vmem:[%s165 + $0x40] sm:$0xff]
      %v181 = vld [vmem:[%s165 + $0x48] sm:$0xff]
      %v182 = vld [vmem:[%s165 + $0x50] sm:$0xff]
      %v183 = vld [vmem:[%s165 + $0x58] sm:$0xff]
      %v184 = vld [vmem:[%s165 + $0x60] sm:$0xff]
      %v185 = vld [vmem:[%s165 + $0x68] sm:$0xff]
      %v186 = vld [vmem:[%s165 + $0x70] sm:$0xff]
      %v187 = vld [vmem:[%s165 + $0x78] sm:$0xff]
      %v188 = vld [vmem:[%s165 + $0x80] sm:$0xff]
      %v189 = vld [vmem:[%s165 + $0x88] sm:$0xff]
      %v190 = vld [vmem:[%s165 + $0x90] sm:$0xff]
      %v191 = vld [vmem:[%s165 + $0x98] sm:$0xff]
      %v192 = vld [vmem:[%s165 + $0xa0] sm:$0xff]
      %v193 = vld [vmem:[%s165 + $0xa8] sm:$0xff]
      %v194 = vld [vmem:[%s165 + $0xb0] sm:$0xff]
      %v195 = vld [vmem:[%s165 + $0xb8] sm:$0xff]
      %v196 = vld [vmem:[%s165 + $0xc0] sm:$0xff]
      %v197 = vld [vmem:[%s165 + $0xc8] sm:$0xff]
      %v198 = vld [vmem:[%s165 + $0xd0] sm:$0xff]
      %v199 = vld [vmem:[%s165 + $0xd8] sm:$0xff]
      %v200 = vld [vmem:[%s165 + $0xe0] sm:$0xff]
      %v201 = vld [vmem:[%s165 + $0xe8] sm:$0xff]
      %v202 = vld [vmem:[%s165 + $0xf0] sm:$0xff]
      %v203 = vld [vmem:[%s165 + $0xf8] sm:$0xff]
      %v204 = vpack.c.bf16 %v173, %v172
      %v205 = vpack.c.bf16 %v175, %v174
      %v206 = vpack.c.bf16 %v177, %v176
      %v207 = vpack.c.bf16 %v179, %v178
      %v208 = vpack.c.bf16 %v181, %v180
      %v209 = vpack.c.bf16 %v183, %v182
      %v210 = vpack.c.bf16 %v185, %v184
      %v211 = vpack.c.bf16 %v187, %v186
      %v212 = vpack.c.bf16 %v189, %v188
      %v213 = vpack.c.bf16 %v191, %v190
      %v214 = vpack.c.bf16 %v193, %v192
      %v215 = vpack.c.bf16 %v195, %v194
      %v216 = vpack.c.bf16 %v197, %v196
      %v217 = vpack.c.bf16 %v199, %v198
      %v218 = vpack.c.bf16 %v201, %v200
      %v219 = vpack.c.bf16 %v203, %v202
      %v220 = vld [vmem:[%s1] sm:$0x3]
      %v221 = vld [vmem:[%s2] sm:$0x1]
      %v223 = vlaneseq
      %v224 = vshrl.u32 %v223, 7
      %v225 = vsub.s32 0, %v224
      %v226 = vrot.slane %v221, %v225
      %vm228 = vcmask 23552
      %v230 = vsel %vm228, %v204, 0
      %v233 = vsel %vm228, %v205, 0
      %v236 = vsel %vm228, %v206, 0
      %v239 = vsel %vm228, %v207, 0
      %v242 = vsel %vm228, %v208, 0
      %v245 = vsel %vm228, %v209, 0
      %v248 = vsel %vm228, %v210, 0
      %v251 = vsel %vm228, %v211, 0
      %v254 = vsel %vm228, %v212, 0
      %v257 = vsel %vm228, %v213, 0
      %v260 = vsel %vm228, %v214, 0
      %v263 = vsel %vm228, %v215, 0
      %v266 = vsel %vm228, %v216, 0
      %v269 = vsel %vm228, %v217, 0
      %v272 = vsel %vm228, %v218, 0
      %v275 = vsel %vm228, %v219, 0
      %vm277 = vcmask 1040384
      %vm278 = vcmask 1041408
      %v279 = vsel %vm277, 4294967295, 65535
      %v280 = vsel %vm278, %v279, 0
      %v282 = vand.u32 %v220, %v280
      %284 = vmatprep.subr.bf16.mxu0 0
      %285 = vmatpush1.bf16.msra.mxu0 %v282
      %286 = vmatprep.subr.bf16.mxu0 0
      %287 = vmatpush1.bf16.msra.mxu0 0
      %288 = vmatprep.subr.bf16.mxu0 0
      %289 = vmatpush1.bf16.msra.mxu0 0
      %290 = vmatprep.subr.bf16.mxu0 0
      %291 = vmatpush1.bf16.msra.mxu0 0
      %292 = vmatprep.subr.bf16.mxu0 0
      %293 = vmatpush1.bf16.msra.mxu0 0
      %294 = vmatprep.subr.bf16.mxu0 0
      %295 = vmatpush1.bf16.msra.mxu0 0
      %296 = vmatprep.subr.bf16.mxu0 0
      %297 = vmatpush1.bf16.msra.mxu0 0
      %298 = vmatprep.subr.bf16.mxu0 0
      %299 = vmatpush1.bf16.msra.mxu0 0
      %300 = vmatprep.subr.bf16.mxu0 0
      %301 = vmatpush1.bf16.msra.mxu0 0
      %302 = vmatprep.subr.bf16.mxu0 0
      %303 = vmatpush1.bf16.msra.mxu0 0
      %304 = vmatprep.subr.bf16.mxu0 0
      %305 = vmatpush1.bf16.msra.mxu0 0
      %306 = vmatprep.subr.bf16.mxu0 0
      %307 = vmatpush1.bf16.msra.mxu0 0
      %308 = vmatprep.subr.bf16.mxu0 0
      %309 = vmatpush1.bf16.msra.mxu0 0
      %310 = vmatprep.subr.bf16.mxu0 0
      %311 = vmatpush1.bf16.msra.mxu0 0
      %312 = vmatprep.subr.bf16.mxu0 0
      %313 = vmatpush1.bf16.msra.mxu0 0
      %314 = vmatprep.subr.bf16.mxu0 0
      %315 = vmatpush1.bf16.msra.mxu0 0
      %316 = vmatprep.mubr.bf16.mxu0 0
      %317 = vmatmul.mubr.bf16.gmra.mrb[0].mxu0 %v230
      %v318 = vpop.f32.mrb[0].mxu0
      %v319 = vadd.f32 %v226, %v318
      %v320 = vpop.f32.mrb[0].mxu0
      %v321 = vpop.f32.mrb[0].mxu0
      %v322 = vadd.f32 %v226, %v321
      %v323 = vpop.f32.mrb[0].mxu0
      %324 = vmatprep.mubr.bf16.mxu0 0
      %325 = vmatmul.mubr.bf16.gmra.mrb[0].mxu0 %v233
      %v326 = vpop.f32.mrb[0].mxu0
      %v327 = vadd.f32 %v226, %v326
      %v328 = vpop.f32.mrb[0].mxu0
      %v329 = vpop.f32.mrb[0].mxu0
      %v330 = vadd.f32 %v226, %v329
      %v331 = vpop.f32.mrb[0].mxu0
      %332 = vmatprep.mubr.bf16.mxu0 0
      %333 = vmatmul.mubr.bf16.gmra.mrb[0].mxu0 %v236
      %v334 = vpop.f32.mrb[0].mxu0
      %v335 = vadd.f32 %v226, %v334
      %v336 = vpop.f32.mrb[0].mxu0
      %v337 = vpop.f32.mrb[0].mxu0
      %v338 = vadd.f32 %v226, %v337
      %v339 = vpop.f32.mrb[0].mxu0
      %340 = vmatprep.mubr.bf16.mxu0 0
      %341 = vmatmul.mubr.bf16.gmra.mrb[0].mxu0 %v239
      %v342 = vpop.f32.mrb[0].mxu0
      %v343 = vadd.f32 %v226, %v342
      %v344 = vpop.f32.mrb[0].mxu0
      %v345 = vpop.f32.mrb[0].mxu0
      %v346 = vadd.f32 %v226, %v345
      %v347 = vpop.f32.mrb[0].mxu0
      %348 = vmatprep.mubr.bf16.mxu0 0
      %349 = vmatmul.mubr.bf16.gmra.mrb[0].mxu0 %v242
      %v350 = vpop.f32.mrb[0].mxu0
      %v351 = vadd.f32 %v226, %v350
      %v352 = vpop.f32.mrb[0].mxu0
      %v353 = vpop.f32.mrb[0].mxu0
      %v354 = vadd.f32 %v226, %v353
      %v355 = vpop.f32.mrb[0].mxu0
      %356 = vmatprep.mubr.bf16.mxu0 0
      %357 = vmatmul.mubr.bf16.gmra.mrb[0].mxu0 %v245
      %v358 = vpop.f32.mrb[0].mxu0
      %v359 = vadd.f32 %v226, %v358
      %v360 = vpop.f32.mrb[0].mxu0
      %v361 = vpop.f32.mrb[0].mxu0
      %v362 = vadd.f32 %v226, %v361
      %v363 = vpop.f32.mrb[0].mxu0
      %364 = vmatprep.mubr.bf16.mxu0 0
      %365 = vmatmul.mubr.bf16.gmra.mrb[0].mxu0 %v248
      %v366 = vpop.f32.mrb[0].mxu0
      %v367 = vadd.f32 %v226, %v366
      %v368 = vpop.f32.mrb[0].mxu0
      %v369 = vpop.f32.mrb[0].mxu0
      %v370 = vadd.f32 %v226, %v369
      %v371 = vpop.f32.mrb[0].mxu0
      %372 = vmatprep.mubr.bf16.mxu0 0
      %373 = vmatmul.mubr.bf16.gmra.mrb[0].mxu0 %v251
      %v374 = vpop.f32.mrb[0].mxu0
      %v375 = vadd.f32 %v226, %v374
      %v376 = vpop.f32.mrb[0].mxu0
      %v377 = vpop.f32.mrb[0].mxu0
      %v378 = vadd.f32 %v226, %v377
      %v379 = vpop.f32.mrb[0].mxu0
      %380 = vmatprep.mubr.bf16.mxu0 0
      %381 = vmatmul.mubr.bf16.gmra.mrb[0].mxu0 %v254
      %v382 = vpop.f32.mrb[0].mxu0
      %v383 = vadd.f32 %v226, %v382
      %v384 = vpop.f32.mrb[0].mxu0
      %v385 = vpop.f32.mrb[0].mxu0
      %v386 = vadd.f32 %v226, %v385
      %v387 = vpop.f32.mrb[0].mxu0
      %388 = vmatprep.mubr.bf16.mxu0 0
      %389 = vmatmul.mubr.bf16.gmra.mrb[0].mxu0 %v257
      %v390 = vpop.f32.mrb[0].mxu0
      %v391 = vadd.f32 %v226, %v390
      %v392 = vpop.f32.mrb[0].mxu0
      %v393 = vpop.f32.mrb[0].mxu0
      %v394 = vadd.f32 %v226, %v393
      %v395 = vpop.f32.mrb[0].mxu0
      %396 = vmatprep.mubr.bf16.mxu0 0
      %397 = vmatmul.mubr.bf16.gmra.mrb[0].mxu0 %v260
      %v398 = vpop.f32.mrb[0].mxu0
      %v399 = vadd.f32 %v226, %v398
      %v400 = vpop.f32.mrb[0].mxu0
      %v401 = vpop.f32.mrb[0].mxu0
      %v402 = vadd.f32 %v226, %v401
      %v403 = vpop.f32.mrb[0].mxu0
      %404 = vmatprep.mubr.bf16.mxu0 0
      %405 = vmatmul.mubr.bf16.gmra.mrb[0].mxu0 %v263
      %v406 = vpop.f32.mrb[0].mxu0
      %v407 = vadd.f32 %v226, %v406
      %v408 = vpop.f32.mrb[0].mxu0
      %v409 = vpop.f32.mrb[0].mxu0
      %v410 = vadd.f32 %v226, %v409
      %v411 = vpop.f32.mrb[0].mxu0
      %412 = vmatprep.mubr.bf16.mxu0 0
      %413 = vmatmul.mubr.bf16.gmra.mrb[0].mxu0 %v266
      %v414 = vpop.f32.mrb[0].mxu0
      %v415 = vadd.f32 %v226, %v414
      %v416 = vpop.f32.mrb[0].mxu0
      %v417 = vpop.f32.mrb[0].mxu0
      %v418 = vadd.f32 %v226, %v417
      %v419 = vpop.f32.mrb[0].mxu0
      %420 = vmatprep.mubr.bf16.mxu0 0
      %421 = vmatmul.mubr.bf16.gmra.mrb[0].mxu0 %v269
      %v422 = vpop.f32.mrb[0].mxu0
      %v423 = vadd.f32 %v226, %v422
      %v424 = vpop.f32.mrb[0].mxu0
      %v425 = vpop.f32.mrb[0].mxu0
      %v426 = vadd.f32 %v226, %v425
      %v427 = vpop.f32.mrb[0].mxu0
      %428 = vmatprep.mubr.bf16.mxu0 0
      %429 = vmatmul.mubr.bf16.gmra.mrb[0].mxu0 %v272
      %v430 = vpop.f32.mrb[0].mxu0
      %v431 = vadd.f32 %v226, %v430
      %v432 = vpop.f32.mrb[0].mxu0
      %v433 = vpop.f32.mrb[0].mxu0
      %v434 = vadd.f32 %v226, %v433
      %v435 = vpop.f32.mrb[0].mxu0
      %436 = vmatprep.mubr.bf16.mxu0 0
      %437 = vmatmul.mubr.bf16.gmra.mrb[0].mxu0 %v275
      %v438 = vpop.f32.mrb[0].mxu0
      %v439 = vadd.f32 %v226, %v438
      %v440 = vpop.f32.mrb[0].mxu0
      %v441 = vpop.f32.mrb[0].mxu0
      %v442 = vadd.f32 %v226, %v441
      %v443 = vpop.f32.mrb[0].mxu0
      %444 = vdwg.mxu0
      %vm445 = vcmp.ge.f32.partialorder %v319, 0.0
      %vm446 = vcmp.ge.f32.partialorder %v322, 0.0
      %vm447 = vcmp.ge.f32.partialorder %v327, 0.0
      %vm448 = vcmp.ge.f32.partialorder %v330, 0.0
      %vm449 = vcmp.ge.f32.partialorder %v335, 0.0
      %vm450 = vcmp.ge.f32.partialorder %v338, 0.0
      %vm451 = vcmp.ge.f32.partialorder %v343, 0.0
      %vm452 = vcmp.ge.f32.partialorder %v346, 0.0
      %vm453 = vcmp.ge.f32.partialorder %v351, 0.0
      %vm454 = vcmp.ge.f32.partialorder %v354, 0.0
      %vm455 = vcmp.ge.f32.partialorder %v359, 0.0
      %vm456 = vcmp.ge.f32.partialorder %v362, 0.0
      %vm457 = vcmp.ge.f32.partialorder %v367, 0.0
      %vm458 = vcmp.ge.f32.partialorder %v370, 0.0
      %vm459 = vcmp.ge.f32.partialorder %v375, 0.0
      %vm460 = vcmp.ge.f32.partialorder %v378, 0.0
      %vm461 = vcmp.ge.f32.partialorder %v383, 0.0
      %vm462 = vcmp.ge.f32.partialorder %v386, 0.0
      %vm463 = vcmp.ge.f32.partialorder %v391, 0.0
      %vm464 = vcmp.ge.f32.partialorder %v394, 0.0
      %vm465 = vcmp.ge.f32.partialorder %v399, 0.0
      %vm466 = vcmp.ge.f32.partialorder %v402, 0.0
      %vm467 = vcmp.ge.f32.partialorder %v407, 0.0
      %vm468 = vcmp.ge.f32.partialorder %v410, 0.0
      %vm469 = vcmp.ge.f32.partialorder %v415, 0.0
      %vm470 = vcmp.ge.f32.partialorder %v418, 0.0
      %vm471 = vcmp.ge.f32.partialorder %v423, 0.0
      %vm472 = vcmp.ge.f32.partialorder %v426, 0.0
      %vm473 = vcmp.ge.f32.partialorder %v431, 0.0
      %vm474 = vcmp.ge.f32.partialorder %v434, 0.0
      %vm475 = vcmp.ge.f32.partialorder %v439, 0.0
      %vm476 = vcmp.ge.f32.partialorder %v442, 0.0
      %v477 = vmul.f32 %v319, 0.2
      %v478 = vmul.f32 %v322, 0.2
      %v479 = vmul.f32 %v327, 0.2
      %v480 = vmul.f32 %v330, 0.2
      %v481 = vmul.f32 %v335, 0.2
      %v482 = vmul.f32 %v338, 0.2
      %v483 = vmul.f32 %v343, 0.2
      %v484 = vmul.f32 %v346, 0.2
      %v485 = vmul.f32 %v351, 0.2
      %v486 = vmul.f32 %v354, 0.2
      %v487 = vmul.f32 %v359, 0.2
      %v488 = vmul.f32 %v362, 0.2
      %v489 = vmul.f32 %v367, 0.2
      %v490 = vmul.f32 %v370, 0.2
      %v491 = vmul.f32 %v375, 0.2
      %v492 = vmul.f32 %v378, 0.2
      %v493 = vmul.f32 %v383, 0.2
      %v494 = vmul.f32 %v386, 0.2
      %v495 = vmul.f32 %v391, 0.2
      %v496 = vmul.f32 %v394, 0.2
      %v497 = vmul.f32 %v399, 0.2
      %v498 = vmul.f32 %v402, 0.2
      %v499 = vmul.f32 %v407, 0.2
      %v500 = vmul.f32 %v410, 0.2
      %v501 = vmul.f32 %v415, 0.2
      %v502 = vmul.f32 %v418, 0.2
      %v503 = vmul.f32 %v423, 0.2
      %v504 = vmul.f32 %v426, 0.2
      %v505 = vmul.f32 %v431, 0.2
      %v506 = vmul.f32 %v434, 0.2
      %v507 = vmul.f32 %v439, 0.2
      %v508 = vmul.f32 %v442, 0.2
      %v509 = vsel %vm445, %v319, %v477
      %v510 = vsel %vm446, %v322, %v478
      %v511 = vsel %vm447, %v327, %v479
      %v512 = vsel %vm448, %v330, %v480
      %v513 = vsel %vm449, %v335, %v481
      %v514 = vsel %vm450, %v338, %v482
      %v515 = vsel %vm451, %v343, %v483
      %v516 = vsel %vm452, %v346, %v484
      %v517 = vsel %vm453, %v351, %v485
      %v518 = vsel %vm454, %v354, %v486
      %v519 = vsel %vm455, %v359, %v487
      %v520 = vsel %vm456, %v362, %v488
      %v521 = vsel %vm457, %v367, %v489
      %v522 = vsel %vm458, %v370, %v490
      %v523 = vsel %vm459, %v375, %v491
      %v524 = vsel %vm460, %v378, %v492
      %v525 = vsel %vm461, %v383, %v493
      %v526 = vsel %vm462, %v386, %v494
      %v527 = vsel %vm463, %v391, %v495
      %v528 = vsel %vm464, %v394, %v496
      %v529 = vsel %vm465, %v399, %v497
      %v530 = vsel %vm466, %v402, %v498
      %v531 = vsel %vm467, %v407, %v499
      %v532 = vsel %vm468, %v410, %v500
      %v533 = vsel %vm469, %v415, %v501
      %v534 = vsel %vm470, %v418, %v502
      %v535 = vsel %vm471, %v423, %v503
      %v536 = vsel %vm472, %v426, %v504
      %v537 = vsel %vm473, %v431, %v505
      %v538 = vsel %vm474, %v434, %v506
      %v539 = vsel %vm475, %v439, %v507
      %v540 = vsel %vm476, %v442, %v508
      %v541 = vmul.f32 %v509, 1.4142135
      %v542 = vmul.f32 %v510, 1.4142135
      %v543 = vmul.f32 %v511, 1.4142135
      %v544 = vmul.f32 %v512, 1.4142135
      %v545 = vmul.f32 %v513, 1.4142135
      %v546 = vmul.f32 %v514, 1.4142135
      %v547 = vmul.f32 %v515, 1.4142135
      %v548 = vmul.f32 %v516, 1.4142135
      %v549 = vmul.f32 %v517, 1.4142135
      %v550 = vmul.f32 %v518, 1.4142135
      %v551 = vmul.f32 %v519, 1.4142135
      %v552 = vmul.f32 %v520, 1.4142135
      %v553 = vmul.f32 %v521, 1.4142135
      %v554 = vmul.f32 %v522, 1.4142135
      %v555 = vmul.f32 %v523, 1.4142135
      %v556 = vmul.f32 %v524, 1.4142135
      %v557 = vmul.f32 %v525, 1.4142135
      %v558 = vmul.f32 %v526, 1.4142135
      %v559 = vmul.f32 %v527, 1.4142135
      %v560 = vmul.f32 %v528, 1.4142135
      %v561 = vmul.f32 %v529, 1.4142135
      %v562 = vmul.f32 %v530, 1.4142135
      %v563 = vmul.f32 %v531, 1.4142135
      %v564 = vmul.f32 %v532, 1.4142135
      %v565 = vmul.f32 %v533, 1.4142135
      %v566 = vmul.f32 %v534, 1.4142135
      %v567 = vmul.f32 %v535, 1.4142135
      %v568 = vmul.f32 %v536, 1.4142135
      %v569 = vmul.f32 %v537, 1.4142135
      %v570 = vmul.f32 %v538, 1.4142135
      %v571 = vmul.f32 %v539, 1.4142135
      %v572 = vmul.f32 %v540, 1.4142135
      %vm573 = vcmask 64512
      %574 = vst.msk [vmem:[%s170] sm:$0xff] %vm573, %v541
      %575 = vst.msk [vmem:[%s170 + $0x8] sm:$0xff] %vm573, %v542
      %576 = vst.msk [vmem:[%s170 + $0x10] sm:$0xff] %vm573, %v543
      %577 = vst.msk [vmem:[%s170 + $0x18] sm:$0xff] %vm573, %v544
      %578 = vst.msk [vmem:[%s170 + $0x20] sm:$0xff] %vm573, %v545
      %579 = vst.msk [vmem:[%s170 + $0x28] sm:$0xff] %vm573, %v546
      %580 = vst.msk [vmem:[%s170 + $0x30] sm:$0xff] %vm573, %v547
      %581 = vst.msk [vmem:[%s170 + $0x38] sm:$0xff] %vm573, %v548
      %582 = vst.msk [vmem:[%s170 + $0x40] sm:$0xff] %vm573, %v549
      %583 = vst.msk [vmem:[%s170 + $0x48] sm:$0xff] %vm573, %v550
      %584 = vst.msk [vmem:[%s170 + $0x50] sm:$0xff] %vm573, %v551
      %585 = vst.msk [vmem:[%s170 + $0x58] sm:$0xff] %vm573, %v552
      %586 = vst.msk [vmem:[%s170 + $0x60] sm:$0xff] %vm573, %v553
      %587 = vst.msk [vmem:[%s170 + $0x68] sm:$0xff] %vm573, %v554
      %588 = vst.msk [vmem:[%s170 + $0x70] sm:$0xff] %vm573, %v555
      %589 = vst.msk [vmem:[%s170 + $0x78] sm:$0xff] %vm573, %v556
      %590 = vst.msk [vmem:[%s170 + $0x80] sm:$0xff] %vm573, %v557
      %591 = vst.msk [vmem:[%s170 + $0x88] sm:$0xff] %vm573, %v558
      %592 = vst.msk [vmem:[%s170 + $0x90] sm:$0xff] %vm573, %v559
      %593 = vst.msk [vmem:[%s170 + $0x98] sm:$0xff] %vm573, %v560
      %594 = vst.msk [vmem:[%s170 + $0xa0] sm:$0xff] %vm573, %v561
      %595 = vst.msk [vmem:[%s170 + $0xa8] sm:$0xff] %vm573, %v562
      %596 = vst.msk [vmem:[%s170 + $0xb0] sm:$0xff] %vm573, %v563
      %597 = vst.msk [vmem:[%s170 + $0xb8] sm:$0xff] %vm573, %v564
      %598 = vst.msk [vmem:[%s170 + $0xc0] sm:$0xff] %vm573, %v565
      %599 = vst.msk [vmem:[%s170 + $0xc8] sm:$0xff] %vm573, %v566
      %600 = vst.msk [vmem:[%s170 + $0xd0] sm:$0xff] %vm573, %v567
      %601 = vst.msk [vmem:[%s170 + $0xd8] sm:$0xff] %vm573, %v568
      %602 = vst.msk [vmem:[%s170 + $0xe0] sm:$0xff] %vm573, %v569
      %603 = vst.msk [vmem:[%s170 + $0xe8] sm:$0xff] %vm573, %v570
      %604 = vst.msk [vmem:[%s170 + $0xf0] sm:$0xff] %vm573, %v571
      %605 = vst.msk [vmem:[%s170 + $0xf8] sm:$0xff] %vm573, %v572
      %p606 = scmp.lt.s32.totalorder %s14, 1
      %s607 = scalar_select %p606, %s14, 1
      %s608 = smul.addr %s607, 32
      %s609 = smul.addr %s608, 8
      %s610 = scalar_lea.vmem %s3, %s609
      // Predicated region
      $region33: #{tpu_custom_call.1} parent=31 // pred_check
        %p611 = pneg %p100
      $region34: #{tpu_custom_call.1} parent=31 // pred_check_branch
        %613 = sbr.rel (%p611) target = $region36
      $region35: #{tpu_custom_call.1} parent=31 // pred_region
        _
      $region36: #{tpu_custom_call.1} parent=31 // pred_fallthru
        _
    $region32: #{tpu_custom_call.1} parent=5 // pred_fallthru
      _
    %p614 = scmp.le.s32.totalorder 2, %s9
    // Predicated region
    $region37: #{tpu_custom_call.1} parent=5 // pred_check
      %p615 = pneg %p614
    $region38: #{tpu_custom_call.1} parent=5 // pred_check_branch
      %617 = sbr.rel (%p615) target = $region40
    $region39: #{tpu_custom_call.1} parent=5 // pred_region
      %s618 = ssub.s32 %s9, 2
      // Predicated region
      $region41: #{tpu_custom_call.1} parent=39 // pred_check
        %p619 = pneg %p106
      $region42: #{tpu_custom_call.1} parent=39 // pred_check_branch
        %621 = sbr.rel (%p619) target = $region44
      $region43: #{tpu_custom_call.1} parent=39 // pred_region
        %p622 = scmp.lt.s32.totalorder %s15, 1
        %s623 = scalar_select %p622, %s15, 1
        %s624 = smul.addr %s623, 32
        %s625 = smul.addr %s624, 8
        %s626 = scalar_lea.vmem %s3, %s625
      $region44: #{tpu_custom_call.1} parent=39 // pred_fallthru
        _
    $region40: #{tpu_custom_call.1} parent=5 // pred_fallthru
      _
  $region6: #{tpu_custom_call.1} parent=0 // loop_footer
    %s13 = sadd.s32 1, %s9
  $region7: #{tpu_custom_call.1} parent=0 // loop_footer_branch
    %8 = sbr.rel target = $region3
  $region8: #{tpu_custom_call.1} parent=0 // loop_exit
    _

</llo_original>
